<compile_context>
chip_gen: v6e
topology: v6e:2x2x1
jax: 0.10.0
libtpu: 0.0.40
codegen_flags: <defaults>
</compile_context>

<pallas_src>
import numpy as np
import jax
import jax.numpy as jnp
from jax import lax
from jax.experimental import pallas as pl
from jax.experimental.pallas import tpu as pltpu


# TODO(synk): ScriptConvModel builds its layer stack from a DSL string via
# `parser.create_layers`, which is not available here.  A fixed representative
# script is hard-coded instead of dynamically parsing arbitrary scripts.
SCRIPT = "conv 8 3x3 pad1 ; relu ; conv 8 3x3 pad1 ; relu ; maxpool 2"
INPUT_SHAPE = (4, 16, 16)   # (C, H, W) as passed to ScriptConvModel.__init__
CIN_PAD = 8                 # conv input channels padded to one sublane tile


# ---------------------------------------------------------------------------
# pltpu.roll direction probe (one-time, import-scope)
# ---------------------------------------------------------------------------
# pltpu.roll is documented to follow jnp.roll semantics (out[i] = x[i - shift]),
# but rotate conventions have drifted across backends/versions before.  A tiny
# 8x128 probe pins the sign once so the fused kernel is version-proof.
def _roll_probe_kernel(x_ref, o_ref):
    o_ref[...] = pltpu.roll(x_ref[...], 1, 1)


def _detect_roll_sign() -> int:
    x = jnp.asarray(np.tile(np.arange(128, dtype=np.float32), (8, 1)))
    y = pl.pallas_call(
        _roll_probe_kernel,
        out_shape=jax.ShapeDtypeStruct((8, 128), jnp.float32),
    )(x)
    v = float(y[0, 0])
    if v == 127.0:      # matches jnp.roll
        return 1
    if v == 1.0:        # opposite convention
        return -1
    raise RuntimeError(f"unexpected pltpu.roll semantics (probe got {v})")


_ROLL_SIGN = _detect_roll_sign()


# ---------------------------------------------------------------------------
# trace-time constant tables / weight packing (tiny, host/XLA glue)
# ---------------------------------------------------------------------------
def _tap_masks(h, w, c):
    """(9, c, h*w) float32 0/1 validity masks for the 3x3 taps (zero padding)."""
    m = np.zeros((9, c, h, w), np.float32)
    for t in range(9):
        dh, dw = t // 3 - 1, t % 3 - 1
        m[t, :, max(0, -dh):min(h, h - dh), max(0, -dw):min(w, w - dw)] = 1.0
    return jnp.asarray(m.reshape(9, c, h * w))


def _pack_conv_weight(w_hwio, cin_pad):
    """(3,3,Cin,Cout) -> (Cout, 9*cin_pad); taps row-major, Cin zero-padded."""
    kh, kw, cin, cout = w_hwio.shape
    wt = jnp.transpose(w_hwio, (3, 0, 1, 2))                  # (Cout, 3, 3, Cin)
    wt = jnp.pad(wt, ((0, 0), (0, 0), (0, 0), (0, cin_pad - cin)))
    return wt.reshape(cout, kh * kw * cin_pad)


# ---------------------------------------------------------------------------
# fused model: conv(4->8)+relu -> conv(8->8)+relu -> maxpool 2x2
# ---------------------------------------------------------------------------
def init_params(key, cin):
    k1, k2, k3, k4 = jax.random.split(key, 4)
    c1, c2 = 8, 8
    w1 = jax.random.normal(k1, (3, 3, cin, c1), jnp.float32) * (2.0 / (9 * cin)) ** 0.5
    b1 = jax.random.normal(k2, (c1,), jnp.float32) * 0.01
    w2 = jax.random.normal(k3, (3, 3, c1, c2), jnp.float32) * (2.0 / (9 * c1)) ** 0.5
    b2 = jax.random.normal(k4, (c2,), jnp.float32) * 0.01
    return dict(w1=w1, b1=b1, w2=w2, b2=b2)


@jax.jit
def script_conv_model(params, x_nchw):
    """NCHW float32 forward pass of SCRIPT, fused into a single pallas_call."""
    B, C, H, W = x_nchw.shape
    HW = H * W
    C1 = params["b1"].shape[0]
    C2 = params["b2"].shape[0]

    # ---- trace-time glue (tiny): channel pad, flatten HW, pack weights ----
    # NCHW is already channel-first, so flattening H*W onto the lane axis is a
    # pure contiguous reshape (no transpose, no im2col materialization).
    x8 = jnp.pad(x_nchw, ((0, 0), (0, CIN_PAD - C), (0, 0), (0, 0)))
    x8 = x8.reshape(B, CIN_PAD, HW)
    w1f = _pack_conv_weight(params["w1"], CIN_PAD)            # (C1, 72)
    w2f = _pack_conv_weight(params["w2"], CIN_PAD)            # (C2, 72)
    b1 = params["b1"].reshape(C1, 1)
    b2 = params["b2"].reshape(C2, 1)
    masks = _tap_masks(H, W, CIN_PAD)                         # (9, 8, HW) consts

    def kernel(x_ref, m_ref, w1_ref, b1_ref, w2_ref, b2_ref, o_ref, patch_ref):
        def shifted(v, dh, dw):
            # out[c, h*W + w] = v[c, (h+dh)*W + (w+dw)], zero outside the image.
            s = dh * W + dw
            if s != 0:
                # lane rotate runs on the XLU slot; sign fixed by the probe.
                v = pltpu.roll(v, (-s * _ROLL_SIGN) % HW, 1)
            if (dh, dw) != (0, 0):
                v = v * m_ref[(dh + 1) * 3 + (dw + 1)]        # exact 0/1 mask
            return v

        def conv3x3_relu(v, w_ref_, b_ref_):
            # Gather the 9 taps into the (72, HW) VMEM patch buffer with
            # aligned 8-sublane stores, then ONE lane-dense MXU contraction
            #   (Cout, 72) @ (72, HW) -> (Cout, HW); bias + ReLU epilogue.
            for t in range(9):
                dh, dw = t // 3 - 1, t % 3 - 1
                patch_ref[t * CIN_PAD:(t + 1) * CIN_PAD, :] = shifted(v, dh, dw)
            acc = jnp.dot(w_ref_[...], patch_ref[...],
                          preferred_element_type=jnp.float32)
            return jnp.maximum(acc + b_ref_[...], 0.0)        # bias applied once

        x = x_ref[0]                                          # (8, HW) lane-dense
        y1 = conv3x3_relu(x, w1_ref, b1_ref)                  # stays in VMEM
        y2 = conv3x3_relu(y1, w2_ref, b2_ref)                 # stays in VMEM
        # Fused 2x2 window max (top-left aligned); output stays 256 lanes wide
        # so the store is unmasked (v5e has a single vst slot).
        m = jnp.maximum(y2, shifted(y2, 0, 1))
        m = jnp.maximum(m, shifted(y2, 1, 0))
        m = jnp.maximum(m, shifted(y2, 1, 1))
        o_ref[0] = m.astype(o_ref.dtype)

    # Scaling note: at larger H*W, tile the HW axis (multiples of 128/256) and
    # budget blocks + the (72, HW_tile) patch scratch against v7x's 64 MiB VMEM;
    # at larger channel counts, cast activations/weights to bf16 and keep
    # preferred_element_type=f32.  At this size everything is a few KiB.
    win_max = pl.pallas_call(
        kernel,
        out_shape=jax.ShapeDtypeStruct((B, C2, HW), x_nchw.dtype),
        grid=(B,),                  # B=2 grid steps keep both v7x TCs busy
        in_specs=[
            pl.BlockSpec((1, CIN_PAD, HW), lambda b: (b, 0, 0)),
            pl.BlockSpec((9, CIN_PAD, HW), lambda b: (0, 0, 0)),
            pl.BlockSpec((C1, 9 * CIN_PAD), lambda b: (0, 0)),
            pl.BlockSpec((C1, 1), lambda b: (0, 0)),
            pl.BlockSpec((C2, 9 * CIN_PAD), lambda b: (0, 0)),
            pl.BlockSpec((C2, 1), lambda b: (0, 0)),
        ],
        out_specs=pl.BlockSpec((1, C2, HW), lambda b: (b, 0, 0)),
        scratch_shapes=[pltpu.VMEM((9 * CIN_PAD, HW), jnp.float32)],
        compiler_params=pltpu.CompilerParams(
            dimension_semantics=("parallel",)),
    )(x8, masks, w1f, b1, w2f, b2)

    # Stride-2 decimation of the window maxima: pure data movement on a tiny
    # tensor, kept outside so pooled values bypass any extra MXU pass.
    return win_max.reshape(B, C2, H, W)[:, :, ::2, ::2]


# Pure-JAX reference (mirrors PyTorch Conv2d/ReLU/MaxPool2d semantics in NCHW)
def reference_model(params, x_nchw):
    def conv(x, w, b):
        w_oihw = jnp.transpose(w, (3, 2, 0, 1))
        y = lax.conv_general_dilated(
            x, w_oihw, window_strides=(1, 1), padding=((1, 1), (1, 1)),
            dimension_numbers=("NCHW", "OIHW", "NCHW"))
        return jax.nn.relu(y + b[None, :, None, None])
    x = conv(x_nchw, params["w1"], params["b1"])
    x = conv(x, params["w2"], params["b2"])
    return lax.reduce_window(x, -jnp.inf, lax.max,
                             (1, 1, 2, 2), (1, 1, 2, 2), "VALID")


if __name__ == "__main__":
    key = jax.random.PRNGKey(0)
    kx, kp = jax.random.split(key)
    B = 2
    C, H, W = INPUT_SHAPE
    x = jax.random.normal(kx, (B, C, H, W), jnp.float32)
    params = init_params(kp, C)

    out = jax.block_until_ready(script_conv_model(params, x))

    ref = reference_model(params, x)
    assert out.shape == (B, 8, H // 2, W // 2), out.shape
    err = float(jnp.max(jnp.abs(out - ref)))
    assert jnp.allclose(out, ref, atol=1e-4, rtol=1e-4), err
    print("KERNEL_OK")
</pallas_src>

<mosaic_0001>
module attributes {stable_mosaic.version = 11 : i64} {
  func.func @_roll_probe_kernel(%arg0: memref<8x128xf32, #tpu.memory_space<vmem>>, %arg1: memref<8x128xf32, #tpu.memory_space<vmem>>) attributes {dimension_semantics = [], scalar_prefetch = 0 : i64, scratch_operands = 0 : i64, tpu.core_type = #tpu.core_type<tc>} {
    %c0 = arith.constant 0 : index
    %c0_0 = arith.constant 0 : index
    %0 = vector.load %arg0[%c0, %c0_0] : memref<8x128xf32, #tpu.memory_space<vmem>>, vector<8x128xf32>
    %c1_i32 = arith.constant 1 : i32
    %1 = tpu.dynamic_rotate %0 by %c1_i32 dim 1 : vector<8x128xf32>, i32 -> vector<8x128xf32>
    %c0_1 = arith.constant 0 : index
    %c0_2 = arith.constant 0 : index
    %2 = vector.load %arg1[%c0_1, %c0_2] : memref<8x128xf32, #tpu.memory_space<vmem>>, vector<8x128xf32>
    tpu.vector_store %arg1[%c0_1, %c0_2], %1 {strides = array<i32>} : memref<8x128xf32, #tpu.memory_space<vmem>>, vector<8x128xf32>,
    return
  }
}

</mosaic_0001>

<llo_original>
// kernel: tpu_custom_call.1
$region0: #{tpu_custom_call.1}
  #allocation0 [shape = 'u32[]', space=smem, size = 0x4, offset = 0x4, fixed_abs, tag = 'smem constant byte address 0x4 - core index']
  #allocation1 [shape = 'u32[144,128]{1,0:T(1,128)}', space=vmem, size = 0x12000, scoped, tag = 'internal scratch']
  %s0 = inlined_call_operand.hbm [shape: f32[8,128], index: 0, kind: input, shape index: {}]
  %s1 = inlined_call_operand.hbm [shape: f32[8,128], index: 1, kind: output, shape index: {}]
  %s2 = sld [smem:[#allocation0]]
  $region18: #{tpu_custom_call.1} parent=0
    _
  %s4 = ssub.s32 1, %s2
  %s5 = scalar_select 0, %s4, %s2
  $region1: #{tpu_custom_call.1} parent=0
    #allocation2 [shape = 'u8[4096]{0}', space=vmem, size = 0x1000, scoped, tag = 'input window, operand 0, single buffered']
    #allocation3 [shape = 's32[1]{0}', space=sflag, size = 0x4, scoped, tag = 'scoped memory for tpu_custom_call.1']
    #allocation4 [shape = 's32[1]{0}', space=sflag, size = 0x4, scoped, tag = 'scoped memory for tpu_custom_call.1']
    #allocation5 [shape = 'u8[4096]{0}', space=vmem, size = 0x1000, scoped, tag = 'output window, operand 0, single buffered']
    %6 = vsyncpa [#allocation3], 0
    %7 = vsyncpa [#allocation4], 0
    // Predicated region
    $region2: #{tpu_custom_call.1} parent=1 // pred_check
      _
    $region3: #{tpu_custom_call.1} parent=1 // pred_check_branch
      %9 = sbr.rel (0) target = $region5
    $region4: #{tpu_custom_call.1} parent=1 // pred_region
      %s11 = ssub.s32 128, 128
      %12 = vsyncadd [#allocation3], %s11
      %s14 = sshll.u32 [#allocation2], 4
      %s15 = int_to_ptr.vmem [resolvable:$true] %s14
      %17 = dma.hbm_to_vmem [thread:$0]  %s0, 128, %s15, [#allocation3]
    $region5: #{tpu_custom_call.1} parent=1 // pred_fallthru
      _
    // Predicated region
    $region6: #{tpu_custom_call.1} parent=1 // pred_check
      _
    $region7: #{tpu_custom_call.1} parent=1 // pred_check_branch
      %19 = sbr.rel (0) target = $region9
    $region8: #{tpu_custom_call.1} parent=1 // pred_region
      %20 = dma.done [#allocation3], 128
    $region9: #{tpu_custom_call.1} parent=1 // pred_fallthru
      _
    %v21 = vld [vmem:[#allocation2] sm:$0xff]
    %22 = vrot.lane.b32.xlu0 %v21, 1
    %v23 = vpop.permute.xlu0 %22
    %24 = vst [vmem:[#allocation5] sm:$0xff] %v23
    // Predicated region
    $region10: #{tpu_custom_call.1} parent=1 // pred_check
      _
    $region11: #{tpu_custom_call.1} parent=1 // pred_check_branch
      %26 = sbr.rel (0) target = $region13
    $region12: #{tpu_custom_call.1} parent=1 // pred_region
      %s28 = ssub.s32 128, 128
      %29 = vsyncadd [#allocation4], %s28
      %s31 = sshll.u32 [#allocation5], 4
      %s32 = int_to_ptr.vmem [resolvable:$true] %s31
      %34 = dma.vmem_to_hbm [thread:$0]  %s32, 128, %s1, [#allocation4]
    $region13: #{tpu_custom_call.1} parent=1 // pred_fallthru
      _
    // Predicated region
    $region14: #{tpu_custom_call.1} parent=1 // pred_check
      _
    $region15: #{tpu_custom_call.1} parent=1 // pred_check_branch
      %36 = sbr.rel (0) target = $region17
    $region16: #{tpu_custom_call.1} parent=1 // pred_region
      %37 = dma.done [#allocation4], 128
    $region17: #{tpu_custom_call.1} parent=1 // pred_fallthru
      _
    %38 = vsyncpa [#allocation3], 1
    %39 = vsyncpa [#allocation4], 1

</llo_original>
